<compile_context>
chip_gen: v5e
topology: v5e:2x2
jax: 0.10.0
libtpu: 0.0.40
codegen_flags: <defaults>
</compile_context>

<pallas_src>
import jax
import jax.numpy as jnp
from jax.experimental import pallas as pl
from jax.experimental.pallas import tpu as pltpu


def _round_up(x, m):
    return ((x + m - 1) // m) * m


def _make_ln_kernel(epsilon, d_actual, d_padded):
    need_mask = d_padded != d_actual
    inv_n = 1.0 / d_actual
    inv_nm1 = 1.0 / max(d_actual - 1, 1)   # torch.std default: unbiased (N-1)

    def ln_kernel(x_ref, w_ref, b_ref, o_ref):
        x = x_ref[...].astype(jnp.float32)                    # (rb, d_padded)
        if need_mask:
            lane = jax.lax.broadcasted_iota(jnp.int32, x.shape, 1)
            mask = lane < d_actual
            x = jnp.where(mask, x, 0.0)
        mean = jnp.sum(x, axis=-1, keepdims=True) * inv_n      # (rb, 1)
        xc = x - mean
        if need_mask:
            xc = jnp.where(mask, xc, 0.0)                      # keep padded lanes 0
        var = jnp.sum(xc * xc, axis=-1, keepdims=True) * inv_nm1
        std = jnp.sqrt(var)
        # Per-row reciprocal on the EUP (its own bundle slot, effectively free);
        # per-element work is then one mul + one FMA instead of a divide.
        inv = pl.reciprocal(std + epsilon, approx=True)        # (rb, 1)
        w = w_ref[...].astype(jnp.float32)                     # (1, d_padded)
        b = b_ref[...].astype(jnp.float32)
        y = (xc * inv) * w + b
        o_ref[...] = y.astype(o_ref.dtype)

    return ln_kernel


def _default_vmem_limit_bytes():
    # v5e/v6e: 128 MiB physical VMEM; v7x: 64 MiB. Leave headroom for compiler
    # internal scratch rather than claiming the whole thing.
    try:
        cap = pltpu.get_tpu_info().vmem_capacity_bytes
    except Exception:
        cap = 64 << 20                      # conservative fallback (v7x-sized)
    return min(int(cap * 3 // 4), 96 << 20)


def _choose_row_block(rows, d_padded, in_itemsize, vmem_limit_bytes):
    # Live VMEM per grid step ~= double-buffered input tile + double-buffered
    # output tile + ~3 full-size f32 temporaries inside the kernel body.
    per_row = 4 * d_padded * in_itemsize + 3 * d_padded * 4
    budget = vmem_limit_bytes // 2           # extra headroom
    rb = budget // max(per_row, 1)
    rb = min(rb, 1024)                       # diminishing returns past ~1K rows
    rb = min(rb, _round_up(rows, 8))         # don't over-pad tiny inputs
    mult = 8 if in_itemsize >= 4 else 16     # sublane packing for sub-32-bit dtypes
    rb = max((rb // mult) * mult, mult)
    return int(rb)


def layer_norm_pallas(x, w_ln, b_ln, epsilon=1e-4, use_ln=True, row_block=None):
    """x: [..., d_model]; w_ln, b_ln: [d_model]."""
    if not use_ln:
        return x

    orig_shape = x.shape
    d_model = orig_shape[-1]
    x2 = x.reshape(-1, d_model)              # (rows, d_model)
    rows = x2.shape[0]

    d_padded = _round_up(d_model, 128)       # lane-dense loads/stores
    vmem_limit = _default_vmem_limit_bytes()
    if row_block is None:
        row_block = _choose_row_block(rows, d_padded, x.dtype.itemsize, vmem_limit)
    rows_padded = _round_up(rows, row_block)

    w2 = w_ln.reshape(1, d_model)
    b2 = b_ln.reshape(1, d_model)
    if d_padded != d_model:
        # Pad w with 1 and b with 0 so padded output lanes are exactly 0.
        w2 = jnp.pad(w2, ((0, 0), (0, d_padded - d_model)), constant_values=1)
        b2 = jnp.pad(b2, ((0, 0), (0, d_padded - d_model)))
    if d_padded != d_model or rows_padded != rows:
        x2 = jnp.pad(x2, ((0, rows_padded - rows), (0, d_padded - d_model)))

    grid = (rows_padded // row_block,)

    out = pl.pallas_call(
        _make_ln_kernel(float(epsilon), d_model, d_padded),
        out_shape=jax.ShapeDtypeStruct((rows_padded, d_padded), x.dtype),
        grid_spec=pltpu.PrefetchScalarGridSpec(
            num_scalar_prefetch=0,
            grid=grid,
            in_specs=[
                pl.BlockSpec((row_block, d_padded), lambda i: (i, 0)),
                pl.BlockSpec((1, d_padded), lambda i: (0, 0)),
                pl.BlockSpec((1, d_padded), lambda i: (0, 0)),
            ],
            out_specs=pl.BlockSpec((row_block, d_padded), lambda i: (i, 0)),
        ),
        compiler_params=pltpu.CompilerParams(
            dimension_semantics=("parallel",),   # shards grid across v7x's 2 TCs
            vmem_limit_bytes=vmem_limit,
        ),
    )(x2, w2, b2)

    if d_padded != d_model or rows_padded != rows:
        out = out[:rows, :d_model]
    return out.reshape(orig_shape)


if __name__ == "__main__":
    def ref_ln(x, w, b, eps):
        d = x.shape[-1]
        mean = jnp.mean(x, axis=-1, keepdims=True)
        xc = x - mean
        std = jnp.sqrt(jnp.sum(xc * xc, axis=-1, keepdims=True) / (d - 1))
        return xc / (std + eps) * w + b

    epsilon = 1e-4
    key = jax.random.PRNGKey(0)
    k1, k2 = jax.random.split(key)

    # Case 1: lane-dense d_model (multiple of 128), default params (ones/zeros).
    batch, seq, d_model = 2, 8, 128
    x = jax.random.normal(k1, (batch, seq, d_model), dtype=jnp.float32)
    w_ln = jnp.ones((d_model,), dtype=jnp.float32)
    b_ln = jnp.zeros((d_model,), dtype=jnp.float32)
    y = jax.block_until_ready(layer_norm_pallas(x, w_ln, b_ln, epsilon=epsilon))
    y_ref = ref_ln(x, w_ln, b_ln, epsilon)
    assert y.shape == x.shape and y.dtype == x.dtype
    assert bool(jnp.allclose(y, y_ref, rtol=5e-3, atol=5e-3)), \
        float(jnp.max(jnp.abs(y - y_ref)))

    # Case 2: d_model not a multiple of 128 (exercises lane padding + masking)
    # with non-trivial affine parameters.
    batch, seq, d_model = 2, 8, 32
    x = jax.random.normal(k2, (batch, seq, d_model), dtype=jnp.float32)
    w_ln = 1.0 + 0.1 * jnp.arange(d_model, dtype=jnp.float32)
    b_ln = 0.01 * jnp.arange(d_model, dtype=jnp.float32)
    y = jax.block_until_ready(layer_norm_pallas(x, w_ln, b_ln, epsilon=epsilon))
    y_ref = ref_ln(x, w_ln, b_ln, epsilon)
    assert y.shape == x.shape and y.dtype == x.dtype
    assert bool(jnp.allclose(y, y_ref, rtol=5e-3, atol=5e-3)), \
        float(jnp.max(jnp.abs(y - y_ref)))

    print("KERNEL_OK")
</pallas_src>

<mosaic_0001>
module attributes {stable_mosaic.version = 11 : i64} {
  func.func @ln_kernel(%arg0: i32, %arg1: memref<16x128xf32, #tpu.memory_space<vmem>>, %arg2: memref<1x128xf32, #tpu.memory_space<vmem>>, %arg3: memref<1x128xf32, #tpu.memory_space<vmem>>, %arg4: memref<16x128xf32, #tpu.memory_space<vmem>>) attributes {dimension_semantics = [#tpu.dimension_semantics<parallel>], iteration_bounds = array<i64: 1>, scalar_prefetch = 0 : i64, scratch_operands = 0 : i64, tpu.core_type = #tpu.core_type<tc>, window_params = [{transform_indices = @transform_0, window_bounds = array<i64: 16, 128>}, {pipeline_mode = #tpu.pipeline_mode<synchronous>, transform_indices = @transform_1, window_bounds = array<i64: 1, 128>}, {pipeline_mode = #tpu.pipeline_mode<synchronous>, transform_indices = @transform_2, window_bounds = array<i64: 1, 128>}, {transform_indices = @transform_3, window_bounds = array<i64: 16, 128>}]} {
    %c0 = arith.constant 0 : index
    %c0_0 = arith.constant 0 : index
    %0 = vector.load %arg1[%c0, %c0_0] : memref<16x128xf32, #tpu.memory_space<vmem>>, vector<16x128xf32>
    %cst = arith.constant dense<0.000000e+00> : vector<16xf32>
    %1 = vector.multi_reduction <add>, %0, %cst [1] : vector<16x128xf32> to vector<16xf32>
    %2 = vector.shape_cast %1 : vector<16xf32> to vector<16x1xf32>
    %cst_1 = arith.constant 7.812500e-03 : f32
    %3 = vector.broadcast %cst_1 : f32 to vector<16x1xf32>
    %4 = arith.mulf %2, %3 : vector<16x1xf32>
    %5 = vector.broadcast %4 : vector<16x1xf32> to vector<16x128xf32>
    %6 = arith.subf %0, %5 : vector<16x128xf32>
    %7 = arith.mulf %6, %6 : vector<16x128xf32>
    %cst_2 = arith.constant dense<0.000000e+00> : vector<16xf32>
    %8 = vector.multi_reduction <add>, %7, %cst_2 [1] : vector<16x128xf32> to vector<16xf32>
    %9 = vector.shape_cast %8 : vector<16xf32> to vector<16x1xf32>
    %cst_3 = arith.constant 0.00787401571 : f32
    %10 = vector.broadcast %cst_3 : f32 to vector<16x1xf32>
    %11 = arith.mulf %9, %10 : vector<16x1xf32>
    %12 = math.sqrt %11 : vector<16x1xf32>
    %cst_4 = arith.constant 9.99999974E-5 : f32
    %13 = vector.broadcast %cst_4 : f32 to vector<16x1xf32>
    %14 = arith.addf %12, %13 : vector<16x1xf32>
    %15 = tpu.reciprocal %14 {approx = true} : vector<16x1xf32> -> vector<16x1xf32>
    %c0_5 = arith.constant 0 : index
    %c0_6 = arith.constant 0 : index
    %16 = vector.load %arg2[%c0_5, %c0_6] : memref<1x128xf32, #tpu.memory_space<vmem>>, vector<1x128xf32>
    %c0_7 = arith.constant 0 : index
    %c0_8 = arith.constant 0 : index
    %17 = vector.load %arg3[%c0_7, %c0_8] : memref<1x128xf32, #tpu.memory_space<vmem>>, vector<1x128xf32>
    %18 = vector.broadcast %15 : vector<16x1xf32> to vector<16x128xf32>
    %19 = arith.mulf %6, %18 : vector<16x128xf32>
    %20 = vector.broadcast %16 : vector<1x128xf32> to vector<16x128xf32>
    %21 = arith.mulf %19, %20 : vector<16x128xf32>
    %22 = vector.broadcast %17 : vector<1x128xf32> to vector<16x128xf32>
    %23 = arith.addf %21, %22 : vector<16x128xf32>
    %c0_9 = arith.constant 0 : index
    %c0_10 = arith.constant 0 : index
    %24 = vector.load %arg4[%c0_9, %c0_10] : memref<16x128xf32, #tpu.memory_space<vmem>>, vector<16x128xf32>
    tpu.vector_store %arg4[%c0_9, %c0_10], %23 {strides = array<i32>} : memref<16x128xf32, #tpu.memory_space<vmem>>, vector<16x128xf32>,
    return
  }
  func.func @transform_0(%arg0: i32) -> (i32, i32) {
    %c0_i32 = arith.constant 0 : i32
    %c0_i32_0 = arith.constant 0 : i32
    return %arg0, %c0_i32 : i32, i32
  }
  func.func @transform_1(%arg0: i32) -> (i32, i32) {
    %c0_i32 = arith.constant 0 : i32
    %c0_i32_0 = arith.constant 0 : i32
    %c0_i32_1 = arith.constant 0 : i32
    return %c0_i32, %c0_i32_0 : i32, i32
  }
  func.func @transform_2(%arg0: i32) -> (i32, i32) {
    %c0_i32 = arith.constant 0 : i32
    %c0_i32_0 = arith.constant 0 : i32
    %c0_i32_1 = arith.constant 0 : i32
    return %c0_i32, %c0_i32_0 : i32, i32
  }
  func.func @transform_3(%arg0: i32) -> (i32, i32) {
    %c0_i32 = arith.constant 0 : i32
    %c0_i32_0 = arith.constant 0 : i32
    return %arg0, %c0_i32 : i32, i32
  }
}

</mosaic_0001>

<llo_original>
// kernel: tpu_custom_call.1
$region0: #{tpu_custom_call.1}
  #allocation0 [shape = 'u32[]', space=smem, size = 0x4, offset = 0x4, fixed_abs, tag = 'smem constant byte address 0x4 - core index']
  #allocation1 [shape = 'u32[72,128]{1,0:T(1,128)}', space=vmem, size = 0x9000, scoped, tag = 'internal scratch']
  %s0 = inlined_call_operand.hbm [shape: f32[16,128], index: 0, kind: input, shape index: {}]
  %s1 = inlined_call_operand.hbm [shape: f32[1,128], index: 1, kind: input, shape index: {}]
  %s2 = inlined_call_operand.vmem [shape: f32[1,128], index: 2, kind: input, shape index: {}]
  %s3 = inlined_call_operand.hbm [shape: f32[16,128], index: 3, kind: output, shape index: {}]
  %s4 = sld [smem:[#allocation0]]
  $region30: #{tpu_custom_call.1} parent=0
    _
  %s6 = ssub.s32 1, %s4
  %s7 = scalar_select 0, %s6, %s4
  $region1: #{tpu_custom_call.1} parent=0
    #allocation2 [shape = 'u8[8192]{0}', space=vmem, size = 0x2000, scoped, tag = 'input window, operand 0, single buffered']
    #allocation3 [shape = 's32[1]{0}', space=sflag, size = 0x4, scoped, tag = 'scoped memory for tpu_custom_call.1']
    #allocation4 [shape = 's32[1]{0}', space=sflag, size = 0x4, scoped, tag = 'scoped memory for tpu_custom_call.1']
    #allocation5 [shape = 'u8[512]{0}', space=vmem, size = 0x400, scoped, tag = 'input window, operand 1, single buffered']
    #allocation6 [shape = 's32[1]{0}', space=sflag, size = 0x4, scoped, tag = 'scoped memory for tpu_custom_call.1']
    #allocation7 [shape = 'u8[8192]{0}', space=vmem, size = 0x2000, scoped, tag = 'output window, operand 0, single buffered']
    %8 = vsyncpa [#allocation3], 0
    %9 = vsyncpa [#allocation6], 0
    %10 = vsyncpa [#allocation4], 0
    // Predicated region
    $region2: #{tpu_custom_call.1} parent=1 // pred_check
      _
    $region3: #{tpu_custom_call.1} parent=1 // pred_check_branch
      %12 = sbr.rel (0) target = $region5
    $region4: #{tpu_custom_call.1} parent=1 // pred_region
      %14 = vsyncadd [#allocation3], 0
      %s15 = sshll.u32 %s0, 4
      %s16 = int_to_ptr.hbm [resolvable:$true] %s15
      %s17 = sshll.u32 [#allocation2], 4
      %s18 = int_to_ptr.vmem [resolvable:$true] %s17
      %23 = dma.hbm_to_vmem [thread:$0]  %s16, 256, %s18, [#allocation3], 128, 128, 8
    $region5: #{tpu_custom_call.1} parent=1 // pred_fallthru
      _
    // Predicated region
    $region6: #{tpu_custom_call.1} parent=1 // pred_check
      _
    $region7: #{tpu_custom_call.1} parent=1 // pred_check_branch
      %25 = sbr.rel (0) target = $region9
    $region8: #{tpu_custom_call.1} parent=1 // pred_region
      %27 = vsyncadd [#allocation6], 0
      %s29 = sshll.u32 %s1, 4
      %s30 = int_to_ptr.hbm [resolvable:$true] %s29
      %s31 = sshll.u32 [#allocation5], 4
      %s32 = int_to_ptr.vmem [resolvable:$true] %s31
      %34 = dma.hbm_to_vmem [thread:$0]  %s30, 16, %s32, [#allocation6]
    $region9: #{tpu_custom_call.1} parent=1 // pred_fallthru
      _
    // Predicated region
    $region10: #{tpu_custom_call.1} parent=1 // pred_check
      _
    $region11: #{tpu_custom_call.1} parent=1 // pred_check_branch
      %36 = sbr.rel (0) target = $region13
    $region12: #{tpu_custom_call.1} parent=1 // pred_region
      _
    $region13: #{tpu_custom_call.1} parent=1 // pred_fallthru
      _
    // Predicated region
    $region14: #{tpu_custom_call.1} parent=1 // pred_check
      _
    $region15: #{tpu_custom_call.1} parent=1 // pred_check_branch
      %38 = sbr.rel (0) target = $region17
    $region16: #{tpu_custom_call.1} parent=1 // pred_region
      %40 = dma.done [#allocation3], 256
    $region17: #{tpu_custom_call.1} parent=1 // pred_fallthru
      _
    // Predicated region
    $region18: #{tpu_custom_call.1} parent=1 // pred_check
      _
    $region19: #{tpu_custom_call.1} parent=1 // pred_check_branch
      %42 = sbr.rel (0) target = $region21
    $region20: #{tpu_custom_call.1} parent=1 // pred_region
      %44 = dma.done [#allocation6], 16
    $region21: #{tpu_custom_call.1} parent=1 // pred_fallthru
      _
    %v45 = vld [vmem:[#allocation2] sm:$0xff]
    %v46 = vld [vmem:[#allocation2 + $0x8] sm:$0xff]
    %47 = vadd.xlane.f32.xlu0 %v45
    %v48 = vpop.xlane.xlu0 %47
    %49 = vadd.xlane.f32.xlu0 %v46
    %v50 = vpop.xlane.xlu0 %49
    %v51 = vmul.f32 %v48, 0.0078125
    %v52 = vmul.f32 %v50, 0.0078125
    %v53 = vsub.f32 %v45, %v51
    %v54 = vsub.f32 %v46, %v52
    %v55 = vmul.f32 %v53, %v53
    %v56 = vmul.f32 %v54, %v54
    %57 = vadd.xlane.f32.xlu0 %v55
    %v58 = vpop.xlane.xlu0 %57
    %59 = vadd.xlane.f32.xlu0 %v56
    %v60 = vpop.xlane.xlu0 %59
    %v61 = vmul.f32 %v58, 0.007874016
    %v62 = vmul.f32 %v60, 0.007874016
    %v63 = vrsqrt.pop %v61
    %v64 = vmul.f32 %v63, %v61
    %v65 = vmul.f32 %v64, %v63
    %v66 = vmul.f32 0.5, %v65
    %v67 = vsub.f32 1.5, %v66
    %v68 = vmul.f32 %v63, %v67
    %v69 = vmul.f32 %v61, %v68
    %vm70 = vcmp.eq.f32.partialorder %v61, inf
    %v71 = vsel %vm70, %v61, %v69
    %vm72 = vcmp.eq.f32.partialorder %v61, 0.0
    %v73 = vand.u32 %v61, 2147483648
    %v74 = vsel %vm72, %v73, %v71
    %v75 = vrsqrt.pop %v62
    %v76 = vmul.f32 %v75, %v62
    %v77 = vmul.f32 %v76, %v75
    %v78 = vmul.f32 0.5, %v77
    %v79 = vsub.f32 1.5, %v78
    %v80 = vmul.f32 %v75, %v79
    %v81 = vmul.f32 %v62, %v80
    %vm82 = vcmp.eq.f32.partialorder %v62, inf
    %v83 = vsel %vm82, %v62, %v81
    %vm84 = vcmp.eq.f32.partialorder %v62, 0.0
    %v85 = vand.u32 %v62, 2147483648
    %v86 = vsel %vm84, %v85, %v83
    %v87 = vadd.f32 %v74, 0.0001
    %v88 = vadd.f32 %v86, 0.0001
    %v89 = vrcp.pop %v87
    %v90 = vrcp.pop %v88
    %v91 = vld [vmem:[#allocation5] sm:$0x1]
    %v92 = vld [vmem:[%s2] sm:$0x1]
    %v93 = vmul.f32 %v53, %v89
    %v94 = vmul.f32 %v54, %v90
    %v96 = vperm.slane %v91, 0
    %v98 = vmul.f32 %v93, %v96
    %v99 = vmul.f32 %v94, %v96
    %v101 = vperm.slane %v92, 0
    %v103 = vadd.f32 %v98, %v101
    %v104 = vadd.f32 %v99, %v101
    %105 = vst [vmem:[#allocation7] sm:$0xff] %v103
    %106 = vst [vmem:[#allocation7 + $0x8] sm:$0xff] %v104
    // Predicated region
    $region22: #{tpu_custom_call.1} parent=1 // pred_check
      _
    $region23: #{tpu_custom_call.1} parent=1 // pred_check_branch
      %108 = sbr.rel (0) target = $region25
    $region24: #{tpu_custom_call.1} parent=1 // pred_region
      %110 = vsyncadd [#allocation4], 0
      %s111 = sshll.u32 [#allocation7], 4
      %s112 = int_to_ptr.vmem [resolvable:$true] %s111
      %s113 = sshll.u32 %s3, 4
      %s114 = int_to_ptr.hbm [resolvable:$true] %s113
      %119 = dma.vmem_to_hbm [thread:$0]  %s112, 256, %s114, [#allocation4], 128, 128, 8
    $region25: #{tpu_custom_call.1} parent=1 // pred_fallthru
      _
    // Predicated region
    $region26: #{tpu_custom_call.1} parent=1 // pred_check
      _
    $region27: #{tpu_custom_call.1} parent=1 // pred_check_branch
      %121 = sbr.rel (0) target = $region29
    $region28: #{tpu_custom_call.1} parent=1 // pred_region
      %123 = dma.done [#allocation4], 256
    $region29: #{tpu_custom_call.1} parent=1 // pred_fallthru
      _
    %124 = vsyncpa [#allocation3], 1
    %125 = vsyncpa [#allocation6], 1
    %126 = vsyncpa [#allocation4], 1

</llo_original>
